<compile_context>
chip_gen: v5e
topology: v5e:2x2
jax: 0.10.0
libtpu: 0.0.40
codegen_flags: <defaults>
</compile_context>

<pallas_src>
import functools

import jax
import jax.numpy as jnp
from jax import lax
from jax.experimental import pallas as pl
from jax.experimental.pallas import tpu as pltpu

BN_EPS = 1e-5
_STATS_CORES = 2                       # v7x: 2 TensorCores/chip; harmless on 1-TC chips
_VMEM_LIMIT = 56 * 1024 * 1024         # <= v7x physical 64 MiB; plenty on v5e/v6e (128 MiB)


def _round_up(x, m):
    return (x + m - 1) // m * m


def _choose_rows(num_rows, row_width_f32):
    """Rows per grid step: cap the per-step f32 input bytes at ~8 MiB so 512-row
    tiles (≈85% of HBM roofline) survive up to row_width 4096; multiple of 8."""
    cap = max(8, ((8 * 1024 * 1024) // (4 * max(row_width_f32, 1))) // 8 * 8)
    return max(8, min(512, cap, _round_up(num_rows, 8)))


def _choose_row_fold(tokens, channels):
    """Fold r consecutive token rows into the lane dim for the stats pass (a free
    row-major reshape) so small / unaligned C still fills 128 lanes."""
    if channels % 128 == 0:
        return 1
    for r in (128, 64, 32, 16, 8, 4, 2):
        if tokens % r == 0 and (r * channels) % 128 == 0:
            return r
    for r in (8, 4, 2):
        if tokens % r == 0 and r * channels >= 128:
            return r
    return 1


# ----------------------------- pass 1: statistics -----------------------------
def _stats_kernel(x_ref, sum_ref, sq_ref, *, rows_per_block, rows_valid,
                  blocks_total, blocks_per_core, need_mask):
    """Streaming per-lane sum / sum-of-squares partials (one row-0 slot per core)."""
    i = pl.program_id(1)

    @pl.when(i == 0)
    def _():
        sum_ref[...] = jnp.zeros_like(sum_ref)
        sq_ref[...] = jnp.zeros_like(sq_ref)

    x = x_ref[...].astype(jnp.float32)
    if need_mask:
        # The last block may overhang the array (unspecified padding) and, with an
        # odd block count split over two cores, a clamped duplicate block occurs:
        # zero both so they contribute nothing to the sums.
        c = pl.program_id(0)
        b_raw = c * blocks_per_core + i
        b = jnp.minimum(b_raw, blocks_total - 1)
        row0 = b * rows_per_block
        rows = row0 + lax.broadcasted_iota(jnp.int32, x.shape, 0)
        ok = (rows < rows_valid) & (b_raw < blocks_total)
        x = jnp.where(ok, x, 0.0)

    # TODO(synk): one-pass E[x^2]-mean^2 can cancel when |mean| >> std; switch to a
    # shifted/Welford chunk combine if that regime matters.
    sum_ref[0:1, :] += jnp.sum(x, axis=0, keepdims=True)
    sq_ref[0:1, :] += jnp.sum(x * x, axis=0, keepdims=True)


# --------------------- pass 2: apply + ReLU + pool + conv ---------------------
def _apply_fused_kernel(x_ref, scale_ref, shift_ref, w_ref, o_ref, *, c, mxu_dtype):
    """BN-apply + ReLU (f32 VPU) -> pool (even/odd lane halves, 128-aligned static
    slices) -> 1x1-conv matmul (MXU).  The avg-pool 0.5 is folded into scale/shift."""
    y = jnp.maximum(x_ref[...].astype(jnp.float32) * scale_ref[...] + shift_ref[...], 0.0)
    pooled = (y[:, :c] + y[:, c:]).astype(mxu_dtype)
    o_ref[...] = jnp.dot(pooled, w_ref[...],
                         preferred_element_type=jnp.float32).astype(o_ref.dtype)


def _apply_split_kernel(xe_ref, xo_ref, scale_ref, shift_ref, w_ref, o_ref, *, mxu_dtype):
    """Fallback (C % 128 != 0): even/odd tokens arrive as two arrays."""
    s, sh = scale_ref[...], shift_ref[...]
    ya = jnp.maximum(xe_ref[...].astype(jnp.float32) * s + sh, 0.0)
    yb = jnp.maximum(xo_ref[...].astype(jnp.float32) * s + sh, 0.0)
    pooled = (ya + yb).astype(mxu_dtype)
    o_ref[...] = jnp.dot(pooled, w_ref[...],
                         preferred_element_type=jnp.float32).astype(o_ref.dtype)


@functools.partial(jax.jit, static_argnames=("mxu_dtype", "token_major_output"))
def transition_forward(x, gamma, beta, w_conv, *, mxu_dtype=jnp.bfloat16,
                       token_major_output=False):
    """x: (N, C, L) -> (N, C_out, L//2) using training-mode batch statistics.

    token_major_output=True returns (N, L//2, C_out) and skips the back-transpose
    (free win when the consumer accepts token-major layout)."""
    # TODO(synk): PyTorch eval() mode uses running_mean/running_var buffers; this
    # implements training-mode batch statistics (matches reference_forward).
    N, C, L = x.shape
    C_out = w_conv.shape[0]
    assert L % 2 == 0, "AvgPool1d(k=2, s=2) expects even L"
    T = N * L                 # tokens
    P = T // 2                # pooled tokens

    # ---- glue: the ONE materialized layout change (NCL -> token-major) --------
    # TODO(synk): try CompilerParams(allow_input_fusion=...) so XLA feeds this
    # transpose straight into the pallas_call input DMA instead of an HBM copy.
    xt = jnp.transpose(x, (0, 2, 1)).reshape(T, C)

    # ======================= pass 1: BN statistics =============================
    r = _choose_row_fold(T, C)
    W = r * C
    xs = xt.reshape(T // r, W)                          # free row-major reshape
    R = T // r
    tr = _choose_rows(R, W)
    blocks_total = pl.cdiv(R, tr)
    ncores = _STATS_CORES if blocks_total >= _STATS_CORES else 1
    blocks_per_core = pl.cdiv(blocks_total, ncores)
    need_mask = (R % tr != 0) or (ncores * blocks_per_core != blocks_total)

    if ncores * blocks_per_core == blocks_total:
        xs_index = lambda c, i: (c * blocks_per_core + i, 0)
    else:  # clamp the duplicate tail block; the kernel masks it to zero
        xs_index = lambda c, i: (jnp.minimum(c * blocks_per_core + i,
                                             blocks_total - 1), 0)

    # Per-core partials live in row 0 of an (8, W) block (keeps every DMA block
    # shape on the (8, 128) / full-dim grid).
    part_sum, part_sq = pl.pallas_call(
        functools.partial(_stats_kernel, rows_per_block=tr, rows_valid=R,
                          blocks_total=blocks_total,
                          blocks_per_core=blocks_per_core, need_mask=need_mask),
        out_shape=(jax.ShapeDtypeStruct((8 * ncores, W), jnp.float32),
                   jax.ShapeDtypeStruct((8 * ncores, W), jnp.float32)),
        grid_spec=pltpu.PrefetchScalarGridSpec(
            num_scalar_prefetch=0,
            grid=(ncores, blocks_per_core),
            in_specs=[pl.BlockSpec((tr, W), xs_index)],
            out_specs=[pl.BlockSpec((8, W), lambda c, i: (c, 0)),
                       pl.BlockSpec((8, W), lambda c, i: (c, 0))],
        ),
        compiler_params=pltpu.CompilerParams(
            dimension_semantics=("parallel", "arbitrary"),
            vmem_limit_bytes=_VMEM_LIMIT),
        cost_estimate=pl.CostEstimate(flops=3 * T * C, transcendentals=0,
                                      bytes_accessed=T * C * 4),
    )(xs)

    # Tiny (C,)-sized finalize in the wrapper (combines per-core and per-fold
    # partials).  The avg-pool 0.5 is folded here: ReLU(0.5*y) == 0.5*ReLU(y).
    s1 = part_sum[0::8].reshape(ncores * r, C).sum(axis=0)
    s2 = part_sq[0::8].reshape(ncores * r, C).sum(axis=0)
    mean = s1 / T
    var = jnp.maximum(s2 / T - mean * mean, 0.0)
    inv = lax.rsqrt(var + BN_EPS)
    g32 = gamma.astype(jnp.float32)
    b32 = beta.astype(jnp.float32)
    scale = (0.5 * g32 * inv).reshape(1, C)
    shift = (0.5 * (b32 - mean * g32 * inv)).reshape(1, C)

    # =============== pass 2: BN-apply + ReLU + pool + 1x1 conv =================
    # Lane-dense output whenever the padded write stream stays small relative to
    # the two f32 input streams (masked partial stores are the big store lever).
    cop = _round_up(C_out, 128)
    C_out_p = cop if cop <= 2 * C else C_out
    w = jnp.transpose(w_conv[:, :, 0])                  # (C, C_out)
    if C_out_p != C_out:
        w = jnp.pad(w, ((0, 0), (0, C_out_p - C_out)))
    w = w.astype(mxu_dtype)
    # Constant index map -> Pallas keeps the weight resident (no per-step re-DMA).
    w_spec = pl.BlockSpec((C, C_out_p), lambda i: (0, 0))

    tp = _choose_rows(P, 2 * C)
    if C % 128 == 0:
        # Fast path: even/odd tokens are the two 128-aligned lane halves of a
        # free (P, 2C) reinterpretation of the token-major buffer.
        x2 = xt.reshape(P, 2 * C)
        scale2 = jnp.concatenate([scale, scale], axis=1)
        shift2 = jnp.concatenate([shift, shift], axis=1)
        kernel = functools.partial(_apply_fused_kernel, c=C, mxu_dtype=mxu_dtype)
        in_specs = [pl.BlockSpec((tp, 2 * C), lambda i: (i, 0)),
                    pl.BlockSpec((1, 2 * C), lambda i: (0, 0)),
                    pl.BlockSpec((1, 2 * C), lambda i: (0, 0)),
                    w_spec]
        operands = (x2, scale2, shift2, w)
    else:
        # Fallback for unaligned C: strided even/odd split (extra HBM round trip).
        x_even, x_odd = xt[0::2], xt[1::2]
        kernel = functools.partial(_apply_split_kernel, mxu_dtype=mxu_dtype)
        tok_spec = pl.BlockSpec((tp, C), lambda i: (i, 0))
        vec_spec = pl.BlockSpec((1, C), lambda i: (0, 0))
        in_specs = [tok_spec, tok_spec, vec_spec, vec_spec, w_spec]
        operands = (x_even, x_odd, scale, shift, w)

    out2d = pl.pallas_call(
        kernel,
        out_shape=jax.ShapeDtypeStruct((P, C_out_p), jnp.float32),
        grid_spec=pltpu.PrefetchScalarGridSpec(
            num_scalar_prefetch=0,
            grid=(pl.cdiv(P, tp),),
            in_specs=in_specs,
            out_specs=pl.BlockSpec((tp, C_out_p), lambda i: (i, 0)),
        ),
        compiler_params=pltpu.CompilerParams(
            dimension_semantics=("parallel",),
            vmem_limit_bytes=_VMEM_LIMIT),
        cost_estimate=pl.CostEstimate(
            flops=2 * P * C * C_out_p + 6 * T * C,
            transcendentals=0,
            bytes_accessed=T * C * 4 + P * C_out_p * 4
                           + C * C_out_p * jnp.dtype(mxu_dtype).itemsize),
    )(*operands)

    out = out2d[:, :C_out].reshape(N, L // 2, C_out)
    if token_major_output:
        return out
    return jnp.transpose(out, (0, 2, 1))                # back to PyTorch NCL layout


def reference_forward(x, gamma, beta, w_conv):
    """Pure-JAX reference mirroring the PyTorch module (training-mode BN)."""
    mean = jnp.mean(x, axis=(0, 2), keepdims=True)
    var = jnp.mean(jnp.square(x - mean), axis=(0, 2), keepdims=True)
    xn = (x - mean) * lax.rsqrt(var + BN_EPS)
    xn = xn * gamma[None, :, None] + beta[None, :, None]
    xn = jnp.maximum(xn, 0.0)
    h = jnp.einsum("oc,ncl->nol", w_conv[:, :, 0], xn)
    n, co, l = h.shape
    return h.reshape(n, co, l // 2, 2).mean(-1)


def _run_case(key, N, C, L, compression=0.5):
    C_out = max(1, int(C * compression))
    kx, kw, kg, kb = jax.random.split(key, 4)
    x = jax.random.normal(kx, (N, C, L), dtype=jnp.float32)
    gamma = 1.0 + 0.1 * jax.random.normal(kg, (C,), dtype=jnp.float32)
    beta = 0.1 * jax.random.normal(kb, (C,), dtype=jnp.float32)
    bound = 1.0 / float(C) ** 0.5
    w_conv = jax.random.uniform(kw, (C_out, C, 1), dtype=jnp.float32,
                                minval=-bound, maxval=bound)
    ref = reference_forward(x, gamma, beta, w_conv)

    # f32-at-the-MXU path: tight numerical check of the kernel structure.
    out_f32 = jax.block_until_ready(
        transition_forward(x, gamma, beta, w_conv, mxu_dtype=jnp.float32))
    assert out_f32.shape == (N, C_out, L // 2), out_f32.shape
    assert jnp.allclose(out_f32, ref, atol=1e-4, rtol=1e-4), \
        f"f32 mismatch vs reference (N={N}, C={C}, L={L})"

    # Default fast path: bf16 operands at the MXU, f32 accumulate (looser tol).
    out_bf16 = jax.block_until_ready(transition_forward(x, gamma, beta, w_conv))
    assert out_bf16.shape == (N, C_out, L // 2), out_bf16.shape
    assert jnp.allclose(out_bf16, ref, atol=2e-2, rtol=2e-2), \
        f"bf16 mismatch vs reference (N={N}, C={C}, L={L})"


if __name__ == "__main__":
    key = jax.random.PRNGKey(0)
    k1, k2 = jax.random.split(key)
    _run_case(k1, N=2, C=4, L=16)      # unaligned-C fallback (even/odd split path)
    _run_case(k2, N=2, C=128, L=16)    # aligned fast path (fused (P, 2C) single input)
    print("KERNEL_OK")
</pallas_src>

<mosaic_0001>
module attributes {stable_mosaic.version = 11 : i64} {
  func.func @_stats_kernel(%arg0: i32, %arg1: i32, %arg2: memref<8x128xf32, #tpu.memory_space<vmem>>, %arg3: memref<8x128xf32, #tpu.memory_space<vmem>>, %arg4: memref<8x128xf32, #tpu.memory_space<vmem>>) attributes {dimension_semantics = [#tpu.dimension_semantics<parallel>, #tpu.dimension_semantics<arbitrary>], iteration_bounds = array<i64: 1, 1>, scalar_prefetch = 0 : i64, scratch_operands = 0 : i64, tpu.core_type = #tpu.core_type<tc>, window_params = [{transform_indices = @transform_0, window_bounds = array<i64: 8, 128>}, {transform_indices = @transform_1, window_bounds = array<i64: 8, 128>}, {transform_indices = @transform_2, window_bounds = array<i64: 8, 128>}]} {
    %c0_i32 = arith.constant 0 : i32
    %0 = arith.cmpi eq, %arg1, %c0_i32 : i32
    %1 = arith.extui %0 : i1 to i32
    %c0_i32_0 = arith.constant 0 : i32
    %2 = arith.cmpi ne, %1, %c0_i32_0 : i32
    scf.if %2 {
      %cst_15 = arith.constant 0.000000e+00 : f32
      %29 = vector.broadcast %cst_15 : f32 to vector<8x128xf32>
      %c0_16 = arith.constant 0 : index
      %c0_17 = arith.constant 0 : index
      %30 = vector.load %arg3[%c0_16, %c0_17] : memref<8x128xf32, #tpu.memory_space<vmem>>, vector<8x128xf32>
      tpu.vector_store %arg3[%c0_16, %c0_17], %29 {strides = array<i32>} : memref<8x128xf32, #tpu.memory_space<vmem>>, vector<8x128xf32>,
      %cst_18 = arith.constant 0.000000e+00 : f32
      %31 = vector.broadcast %cst_18 : f32 to vector<8x128xf32>
      %c0_19 = arith.constant 0 : index
      %c0_20 = arith.constant 0 : index
      %32 = vector.load %arg4[%c0_19, %c0_20] : memref<8x128xf32, #tpu.memory_space<vmem>>, vector<8x128xf32>
      tpu.vector_store %arg4[%c0_19, %c0_20], %31 {strides = array<i32>} : memref<8x128xf32, #tpu.memory_space<vmem>>, vector<8x128xf32>,
    } else {
    }
    %c0 = arith.constant 0 : index
    %c0_1 = arith.constant 0 : index
    %3 = vector.load %arg2[%c0, %c0_1] : memref<8x128xf32, #tpu.memory_space<vmem>>, vector<8x128xf32>
    %c1_i32 = arith.constant 1 : i32
    %4 = arith.muli %arg0, %c1_i32 : i32
    %5 = arith.addi %4, %arg1 : i32
    %c0_i32_2 = arith.constant 0 : i32
    %6 = arith.minsi %5, %c0_i32_2 : i32
    %c8_i32 = arith.constant 8 : i32
    %7 = arith.muli %6, %c8_i32 : i32
    %8 = tpu.iota {dimensions = array<i32: 0>} : vector<8x128xi32>
    %9 = vector.broadcast %7 : i32 to vector<8x128xi32>
    %10 = arith.addi %9, %8 : vector<8x128xi32>
    %c1_i32_3 = arith.constant 1 : i32
    %11 = vector.broadcast %c1_i32_3 : i32 to vector<8x128xi32>
    %12 = arith.cmpi slt, %10, %11 : vector<8x128xi32>
    %c1_i32_4 = arith.constant 1 : i32
    %13 = arith.cmpi slt, %5, %c1_i32_4 : i32
    %14 = vector.broadcast %13 : i1 to vector<8x128xi1>
    %15 = arith.andi %12, %14 : vector<8x128xi1>
    %cst = arith.constant 0.000000e+00 : f32
    %16 = vector.broadcast %cst : f32 to vector<8x128xf32>
    %17 = arith.select %15, %3, %16 : vector<8x128xi1>, vector<8x128xf32>
    %c0_5 = arith.constant 0 : index
    %c0_6 = arith.constant 0 : index
    %18 = vector.load %arg3[%c0_5, %c0_6] : memref<8x128xf32, #tpu.memory_space<vmem>>, vector<1x128xf32>
    %cst_7 = arith.constant dense<0.000000e+00> : vector<128xf32>
    %19 = vector.multi_reduction <add>, %17, %cst_7 [0] : vector<8x128xf32> to vector<128xf32>
    %20 = vector.shape_cast %19 : vector<128xf32> to vector<1x128xf32>
    %21 = arith.addf %18, %20 : vector<1x128xf32>
    %c0_8 = arith.constant 0 : index
    %c0_9 = arith.constant 0 : index
    %22 = vector.load %arg3[%c0_8, %c0_9] : memref<8x128xf32, #tpu.memory_space<vmem>>, vector<1x128xf32>
    tpu.vector_store %arg3[%c0_8, %c0_9], %21 {strides = array<i32>} : memref<8x128xf32, #tpu.memory_space<vmem>>, vector<1x128xf32>,
    %c0_10 = arith.constant 0 : index
    %c0_11 = arith.constant 0 : index
    %23 = vector.load %arg4[%c0_10, %c0_11] : memref<8x128xf32, #tpu.memory_space<vmem>>, vector<1x128xf32>
    %24 = arith.mulf %17, %17 : vector<8x128xf32>
    %cst_12 = arith.constant dense<0.000000e+00> : vector<128xf32>
    %25 = vector.multi_reduction <add>, %24, %cst_12 [0] : vector<8x128xf32> to vector<128xf32>
    %26 = vector.shape_cast %25 : vector<128xf32> to vector<1x128xf32>
    %27 = arith.addf %23, %26 : vector<1x128xf32>
    %c0_13 = arith.constant 0 : index
    %c0_14 = arith.constant 0 : index
    %28 = vector.load %arg4[%c0_13, %c0_14] : memref<8x128xf32, #tpu.memory_space<vmem>>, vector<1x128xf32>
    tpu.vector_store %arg4[%c0_13, %c0_14], %27 {strides = array<i32>} : memref<8x128xf32, #tpu.memory_space<vmem>>, vector<1x128xf32>,
    return
  }
  func.func @transform_0(%arg0: i32, %arg1: i32) -> (i32, i32) {
    %c1_i32 = arith.constant 1 : i32
    %0 = arith.muli %arg0, %c1_i32 : i32
    %1 = arith.addi %0, %arg1 : i32
    %c0_i32 = arith.constant 0 : i32
    %c0_i32_0 = arith.constant 0 : i32
    return %1, %c0_i32 : i32, i32
  }
  func.func @transform_1(%arg0: i32, %arg1: i32) -> (i32, i32) {
    %c0_i32 = arith.constant 0 : i32
    %c0_i32_0 = arith.constant 0 : i32
    return %arg0, %c0_i32 : i32, i32
  }
  func.func @transform_2(%arg0: i32, %arg1: i32) -> (i32, i32) {
    %c0_i32 = arith.constant 0 : i32
    %c0_i32_0 = arith.constant 0 : i32
    return %arg0, %c0_i32 : i32, i32
  }
}

module attributes {stable_mosaic.version = 11 : i64} {
  func.func @_apply_split_kernel(%arg0: i32, %arg1: memref<16x4xf32, #tpu.memory_space<vmem>>, %arg2: memref<16x4xf32, #tpu.memory_space<vmem>>, %arg3: memref<1x4xf32, #tpu.memory_space<vmem>>, %arg4: memref<1x4xf32, #tpu.memory_space<vmem>>, %arg5: memref<4x2xf32, #tpu.memory_space<vmem>>, %arg6: memref<16x2xf32, #tpu.memory_space<vmem>>) attributes {dimension_semantics = [#tpu.dimension_semantics<parallel>], iteration_bounds = array<i64: 1>, scalar_prefetch = 0 : i64, scratch_operands = 0 : i64, tpu.core_type = #tpu.core_type<tc>, window_params = [{transform_indices = @transform_0, window_bounds = array<i64: 16, 4>}, {transform_indices = @transform_1, window_bounds = array<i64: 16, 4>}, {pipeline_mode = #tpu.pipeline_mode<synchronous>, transform_indices = @transform_2, window_bounds = array<i64: 1, 4>}, {pipeline_mode = #tpu.pipeline_mode<synchronous>, transform_indices = @transform_3, window_bounds = array<i64: 1, 4>}, {pipeline_mode = #tpu.pipeline_mode<synchronous>, transform_indices = @transform_4, window_bounds = array<i64: 4, 2>}, {transform_indices = @transform_5, window_bounds = array<i64: 16, 2>}]} {
    %c0 = arith.constant 0 : index
    %c0_0 = arith.constant 0 : index
    %0 = vector.load %arg3[%c0, %c0_0] : memref<1x4xf32, #tpu.memory_space<vmem>>, vector<1x4xf32>
    %c0_1 = arith.constant 0 : index
    %c0_2 = arith.constant 0 : index
    %1 = vector.load %arg4[%c0_1, %c0_2] : memref<1x4xf32, #tpu.memory_space<vmem>>, vector<1x4xf32>
    %c0_3 = arith.constant 0 : index
    %c0_4 = arith.constant 0 : index
    %2 = vector.load %arg1[%c0_3, %c0_4] : memref<16x4xf32, #tpu.memory_space<vmem>>, vector<16x4xf32>
    %3 = vector.broadcast %0 : vector<1x4xf32> to vector<16x4xf32>
    %4 = arith.mulf %2, %3 : vector<16x4xf32>
    %5 = vector.broadcast %1 : vector<1x4xf32> to vector<16x4xf32>
    %6 = arith.addf %4, %5 : vector<16x4xf32>
    %cst = arith.constant 0.000000e+00 : f32
    %7 = vector.broadcast %cst : f32 to vector<16x4xf32>
    %8 = arith.maximumf %6, %7 : vector<16x4xf32>
    %c0_5 = arith.constant 0 : index
    %c0_6 = arith.constant 0 : index
    %9 = vector.load %arg2[%c0_5, %c0_6] : memref<16x4xf32, #tpu.memory_space<vmem>>, vector<16x4xf32>
    %10 = vector.broadcast %0 : vector<1x4xf32> to vector<16x4xf32>
    %11 = arith.mulf %9, %10 : vector<16x4xf32>
    %12 = vector.broadcast %1 : vector<1x4xf32> to vector<16x4xf32>
    %13 = arith.addf %11, %12 : vector<16x4xf32>
    %cst_7 = arith.constant 0.000000e+00 : f32
    %14 = vector.broadcast %cst_7 : f32 to vector<16x4xf32>
    %15 = arith.maximumf %13, %14 : vector<16x4xf32>
    %16 = arith.addf %8, %15 : vector<16x4xf32>
    %c0_8 = arith.constant 0 : index
    %c0_9 = arith.constant 0 : index
    %17 = vector.load %arg5[%c0_8, %c0_9] : memref<4x2xf32, #tpu.memory_space<vmem>>, vector<4x2xf32>
    %cst_10 = arith.constant dense<0.000000e+00> : vector<16x2xf32>
    %18 = tpu.matmul %16, %17, %cst_10 {dimension_numbers = #tpu.dot_dimension_numbers<[1], [0], [0], [1], [0, 0, 1, 1], [], []>} : vector<16x4xf32>, vector<4x2xf32>, vector<16x2xf32> -> vector<16x2xf32>
    %c0_11 = arith.constant 0 : index
    %c0_12 = arith.constant 0 : index
    %19 = vector.load %arg6[%c0_11, %c0_12] : memref<16x2xf32, #tpu.memory_space<vmem>>, vector<16x2xf32>
    tpu.vector_store %arg6[%c0_11, %c0_12], %18 {strides = array<i32>} : memref<16x2xf32, #tpu.memory_space<vmem>>, vector<16x2xf32>,
    return
  }
  func.func @transform_0(%arg0: i32) -> (i32, i32) {
    %c0_i32 = arith.constant 0 : i32
    %c0_i32_0 = arith.constant 0 : i32
    return %arg0, %c0_i32 : i32, i32
  }
  func.func @transform_1(%arg0: i32) -> (i32, i32) {
    %c0_i32 = arith.constant 0 : i32
    %c0_i32_0 = arith.constant 0 : i32
    return %arg0, %c0_i32 : i32, i32
  }
  func.func @transform_2(%arg0: i32) -> (i32, i32) {
    %c0_i32 = arith.constant 0 : i32
    %c0_i32_0 = arith.constant 0 : i32
    %c0_i32_1 = arith.constant 0 : i32
    return %c0_i32, %c0_i32_0 : i32, i32
  }
  func.func @transform_3(%arg0: i32) -> (i32, i32) {
    %c0_i32 = arith.constant 0 : i32
    %c0_i32_0 = arith.constant 0 : i32
    %c0_i32_1 = arith.constant 0 : i32
    return %c0_i32, %c0_i32_0 : i32, i32
  }
  func.func @transform_4(%arg0: i32) -> (i32, i32) {
    %c0_i32 = arith.constant 0 : i32
    %c0_i32_0 = arith.constant 0 : i32
    %c0_i32_1 = arith.constant 0 : i32
    return %c0_i32, %c0_i32_0 : i32, i32
  }
  func.func @transform_5(%arg0: i32) -> (i32, i32) {
    %c0_i32 = arith.constant 0 : i32
    %c0_i32_0 = arith.constant 0 : i32
    return %arg0, %c0_i32 : i32, i32
  }
}

</mosaic_0001>

<llo_original>
// kernel: transition_forward.2
$region0: #{transition_forward.2}
  #allocation0 [shape = 'u32[]', space=smem, size = 0x4, offset = 0x4, fixed_abs, tag = 'smem constant byte address 0x4 - core index']
  #allocation1 [shape = 'u32[72,128]{1,0:T(1,128)}', space=vmem, size = 0x9000, scoped, tag = 'internal scratch']
  %s0 = inlined_call_operand.vmem [shape: f32[1,128], index: 0, kind: input, shape index: {}]
  %s1 = inlined_call_operand.vmem [shape: f32[8,128], index: 1, kind: output, shape index: {0}]
  %s2 = inlined_call_operand.vmem [shape: f32[8,128], index: 2, kind: output, shape index: {1}]
  %3 = xla_tuple %s1, %s2
  %s4 = sld [smem:[#allocation0]]
  $region26: #{transition_forward.2} parent=0
    _
  %s6 = ssub.s32 1, %s4
  %s7 = scalar_select 0, %s6, %s4
  // Predicated region
  $region2: #{transition_forward.2} parent=0 // pred_check
    _
  $region3: #{transition_forward.2} parent=0 // pred_check_branch
    %9 = sbr.rel (0) target = $region5
  $region4: #{transition_forward.2} parent=0 // pred_region
    %s10 = sadd.s32 0, 0
    %s11 = smul.u32 8, %s10
    %s12 = ssub.s32 1, %s11
    %p13 = scmp.lt.s32.totalorder %s11, 0
    %s14 = scalar_select %p13, %s11, 0
    %s15 = scalar_lea.vmem %s0, %s14
    %s16 = sadd.s32 0, 0
    %s17 = smul.u32 8, %s16
    %s18 = ssub.s32 1, %s17
  $region5: #{transition_forward.2} parent=0 // pred_fallthru
    _
  %s19 = sadd.s32 0, 0
  %s20 = smul.u32 8, %s19
  %s21 = ssub.s32 1, %s20
  %p22 = scmp.lt.s32.totalorder %s20, 0
  %s23 = scalar_select %p22, %s20, 0
  %s24 = scalar_lea.vmem %s0, %s23
  %s25 = sadd.s32 0, 0
  %s26 = smul.u32 8, %s25
  %s27 = ssub.s32 1, %s26
  %p28 = scmp.lt.s32.totalorder %s26, 0
  %s29 = scalar_select %p28, %s26, 0
  %s30 = scalar_lea.vmem %s0, %s29
  %s31 = sadd.s32 0, 0
  %s32 = smul.u32 8, %s31
  %s33 = ssub.s32 1, %s32
  %p34 = scmp.eq.s32.totalorder 0, 0
  // Predicated region
  $region6: #{transition_forward.2} parent=0 // pred_check
    %p35 = pneg %p34
  $region7: #{transition_forward.2} parent=0 // pred_check_branch
    %37 = sbr.rel (%p35) target = $region9
  $region8: #{transition_forward.2} parent=0 // pred_region
    %38 = vst [vmem:[%s1] sm:$0xff] 0.0
    %39 = vst [vmem:[%s2] sm:$0xff] 0.0
  $region9: #{transition_forward.2} parent=0 // pred_fallthru
    _
  %v40 = vld [vmem:[%s30] sm:$0xff]
  %s41 = sadd.s32 0, 0
  %p42 = scmp.lt.s32.totalorder %s41, 0
  %s43 = scalar_select %p42, %s41, 0
  %s44 = smul.u32 %s43, 8
  %v45 = vlaneseq
  %v46 = vshrl.u32 %v45, 7
  %v47 = vstv %s44
  %v48 = vadd.s32 %v47, %v46
  %vm49 = vcmp.lt.s32.totalorder %v48, 1
  %p50 = scmp.lt.s32.totalorder %s41, 1
  %s51 = scalar_select %p50, 1, 0
  %v52 = vstv %s51
  %vm53 = vcmp.eq.s32.totalorder %v52, 1
  %vm54 = vmand %vm49, %vm53
  %v55 = vsel %vm54, %v40, 0.0
  %v56 = vld [vmem:[%s1] sm:$0x1]
  %v57 = vrot.slane %v55, 4
  %v58 = vadd.f32 %v55, %v57
  %v59 = vrot.slane %v58, 2
  %v60 = vadd.f32 %v58, %v59
  %v61 = vrot.slane %v60, 1
  %v62 = vadd.f32 %v60, %v61
  %v63 = vadd.f32 %v56, %v62
  %64 = vst [vmem:[%s1] sm:$0x1] %v63
  %v65 = vld [vmem:[%s2] sm:$0x1]
  %v66 = vmul.f32 %v55, %v55
  %v67 = vrot.slane %v66, 4
  %v68 = vadd.f32 %v66, %v67
  %v69 = vrot.slane %v68, 2
  %v70 = vadd.f32 %v68, %v69
  %v71 = vrot.slane %v70, 1
  %v72 = vadd.f32 %v70, %v71
  %v73 = vadd.f32 %v65, %v72
  %74 = vst [vmem:[%s2] sm:$0x1] %v73
  // Predicated region
  $region10: #{transition_forward.2} parent=0 // pred_check
    _
  $region11: #{transition_forward.2} parent=0 // pred_check_branch
    %76 = sbr.rel (0) target = $region13
  $region12: #{transition_forward.2} parent=0 // pred_region
    _
  $region13: #{transition_forward.2} parent=0 // pred_fallthru
    _
  // Predicated region
  $region14: #{transition_forward.2} parent=0 // pred_check
    _
  $region15: #{transition_forward.2} parent=0 // pred_check_branch
    %78 = sbr.rel (0) target = $region17
  $region16: #{transition_forward.2} parent=0 // pred_region
    _
  $region17: #{transition_forward.2} parent=0 // pred_fallthru
    _
  // Predicated region
  $region18: #{transition_forward.2} parent=0 // pred_check
    _
  $region19: #{transition_forward.2} parent=0 // pred_check_branch
    %80 = sbr.rel (0) target = $region21
  $region20: #{transition_forward.2} parent=0 // pred_region
    _
  $region21: #{transition_forward.2} parent=0 // pred_fallthru
    _
  // Predicated region
  $region22: #{transition_forward.2} parent=0 // pred_check
    _
  $region23: #{transition_forward.2} parent=0 // pred_check_branch
    %82 = sbr.rel (0) target = $region25
  $region24: #{transition_forward.2} parent=0 // pred_region
    _
  $region25: #{transition_forward.2} parent=0 // pred_fallthru
    _

// kernel: transition_forward.3
$region0: #{transition_forward.3}
  #allocation0 [shape = 'u32[]', space=smem, size = 0x4, offset = 0x4, fixed_abs, tag = 'smem constant byte address 0x4 - core index']
  #allocation1 [shape = 'u32[72,128]{1,0:T(1,128)}', space=vmem, size = 0x9000, scoped, tag = 'internal scratch']
  %s0 = inlined_call_operand.vmem [shape: f32[16,4], index: 0, kind: input, shape index: {}]
  %s1 = inlined_call_operand.vmem [shape: f32[16,4], index: 1, kind: input, shape index: {}]
  %s2 = inlined_call_operand.vmem [shape: f32[1,4], index: 2, kind: input, shape index: {}]
  %s3 = inlined_call_operand.vmem [shape: f32[1,4], index: 3, kind: input, shape index: {}]
  %s4 = inlined_call_operand.vmem [shape: f32[4,2], index: 4, kind: input, shape index: {}]
  %s5 = inlined_call_operand.vmem [shape: f32[16,2], index: 5, kind: output, shape index: {}]
  %s6 = sld [smem:[#allocation0]]
  $region30: #{transition_forward.3} parent=0
    _
  %s8 = ssub.s32 1, %s6
  %s9 = scalar_select 0, %s8, %s6
  // Predicated region
  $region2: #{transition_forward.3} parent=0 // pred_check
    _
  $region3: #{transition_forward.3} parent=0 // pred_check_branch
    %11 = sbr.rel (0) target = $region5
  $region4: #{transition_forward.3} parent=0 // pred_region
    _
  $region5: #{transition_forward.3} parent=0 // pred_fallthru
    _
  // Predicated region
  $region6: #{transition_forward.3} parent=0 // pred_check
    _
  $region7: #{transition_forward.3} parent=0 // pred_check_branch
    %13 = sbr.rel (0) target = $region9
  $region8: #{transition_forward.3} parent=0 // pred_region
    _
  $region9: #{transition_forward.3} parent=0 // pred_fallthru
    _
  // Predicated region
  $region10: #{transition_forward.3} parent=0 // pred_check
    _
  $region11: #{transition_forward.3} parent=0 // pred_check_branch
    %15 = sbr.rel (0) target = $region13
  $region12: #{transition_forward.3} parent=0 // pred_region
    _
  $region13: #{transition_forward.3} parent=0 // pred_fallthru
    _
  // Predicated region
  $region14: #{transition_forward.3} parent=0 // pred_check
    _
  $region15: #{transition_forward.3} parent=0 // pred_check_branch
    %17 = sbr.rel (0) target = $region17
  $region16: #{transition_forward.3} parent=0 // pred_region
    _
  $region17: #{transition_forward.3} parent=0 // pred_fallthru
    _
  // Predicated region
  $region18: #{transition_forward.3} parent=0 // pred_check
    _
  $region19: #{transition_forward.3} parent=0 // pred_check_branch
    %19 = sbr.rel (0) target = $region21
  $region20: #{transition_forward.3} parent=0 // pred_region
    _
  $region21: #{transition_forward.3} parent=0 // pred_fallthru
    _
  %v20 = vld [vmem:[%s2] sm:$0x1]
  %v21 = vld [vmem:[%s3] sm:$0x1]
  %v22 = vld [vmem:[%s0] sm:$0xff]
  %v23 = vld [vmem:[%s0 + $0x8] sm:$0xff]
  %v25 = vperm.slane %v20, 0
  %v27 = vmul.f32 %v22, %v25
  %v28 = vmul.f32 %v23, %v25
  %v30 = vperm.slane %v21, 0
  %v32 = vadd.f32 %v27, %v30
  %v33 = vadd.f32 %v28, %v30
  %v34 = vmax.f32 %v32, 0.0
  %v35 = vmax.f32 %v33, 0.0
  %v36 = vld [vmem:[%s1] sm:$0xff]
  %v37 = vld [vmem:[%s1 + $0x8] sm:$0xff]
  %v38 = vmul.f32 %v36, %v25
  %v39 = vmul.f32 %v37, %v25
  %v40 = vadd.f32 %v38, %v30
  %v41 = vadd.f32 %v39, %v30
  %v42 = vmax.f32 %v40, 0.0
  %v43 = vmax.f32 %v41, 0.0
  %v44 = vadd.f32 %v34, %v42
  %v45 = vadd.f32 %v35, %v43
  %v46 = vld [vmem:[%s4] sm:$0xf]
  %vm47 = vcmask 31744
  %v49 = vsel %vm47, %v44, 0
  %v52 = vsel %vm47, %v45, 0
  %vm54 = vcmask 1043456
  %v56 = vsel %vm54, %v46, 0
  %58 = vmatpush.msra.mxu0 0.0
  %59 = vmatpush.msra.mxu0 0.0
  %60 = vmatpush.msra.mxu0 0.0
  %61 = vmatpush.msra.mxu0 0.0
  %62 = vmatpush.msra.mxu0 0.0
  %63 = vmatpush.msra.mxu0 0.0
  %64 = vmatpush.msra.mxu0 0.0
  %65 = vmatpush.msra.mxu0 0.0
  %66 = vmatpush.msra.mxu0 0.0
  %67 = vmatpush.msra.mxu0 0.0
  %68 = vmatpush.msra.mxu0 0.0
  %69 = vmatpush.msra.mxu0 0.0
  %70 = vmatpush.msra.mxu0 0.0
  %71 = vmatpush.msra.mxu0 0.0
  %72 = vmatpush.msra.mxu0 0.0
  %73 = vmatpush.msra.mxu0 %v56
  %74 = vmatmul.f32.gmra.mxu0 %v49
  %v75 = vpop.f32.mrf.mxu0
  %v76 = vadd.f32 0.0, %v75
  %77 = vmatmul.f32.gmra.mxu0 %v52
  %v78 = vpop.f32.mrf.mxu0
  %v79 = vadd.f32 0.0, %v78
  %80 = vdwg.mxu0
  %vm81 = vcmask 15360
  %82 = vst.msk [vmem:[%s5] sm:$0xff] %vm81, %v76
  %83 = vst.msk [vmem:[%s5 + $0x8] sm:$0xff] %vm81, %v79
  // Predicated region
  $region22: #{transition_forward.3} parent=0 // pred_check
    _
  $region23: #{transition_forward.3} parent=0 // pred_check_branch
    %85 = sbr.rel (0) target = $region25
  $region24: #{transition_forward.3} parent=0 // pred_region
    _
  $region25: #{transition_forward.3} parent=0 // pred_fallthru
    _
  // Predicated region
  $region26: #{transition_forward.3} parent=0 // pred_check
    _
  $region27: #{transition_forward.3} parent=0 // pred_check_branch
    %87 = sbr.rel (0) target = $region29
  $region28: #{transition_forward.3} parent=0 // pred_region
    _
  $region29: #{transition_forward.3} parent=0 // pred_fallthru
    _

</llo_original>
